<compile_context>
chip_gen: v6e
topology: v6e:2x2x1
jax: 0.10.0
libtpu: 0.0.40
codegen_flags: <defaults>
</compile_context>

<pallas_src>
import math

import jax
import jax.numpy as jnp
from jax.experimental import pallas as pl
from jax.experimental.pallas import tpu as pltpu


# ----------------------------- Pallas kernel --------------------------------

def timestep_embedder_kernel(
    t_ref,        # (TB, 1)   f32 timesteps (one per row)
    freqs_ref,    # (1, F)    f32 duplicated frequency table [freqs, freqs]
    phase_ref,    # (1, F)    f32 phase table [pi/2]*half ++ [0]*half
    w1_ref,       # (F, Hp)   bf16
    b1_ref,       # (1, Hp)   f32
    w2_ref,       # (Hp, Hp)  bf16
    b2_ref,       # (1, Hp)   f32
    o_ref,        # (TB, Hp)
):
    t = t_ref[...]                                        # (TB, 1)
    # single EUP pass: concat([cos(a), sin(a)]) == sin(a_dup + phase)
    args = t * freqs_ref[...] + phase_ref[...]            # (TB, F) f32 (keep f32!)
    emb = jnp.sin(args).astype(jnp.bfloat16)              # values in [-1, 1]

    # Linear(F, H) -> SiLU -> Linear(H, H); bf16 MXU operands, f32 accumulation
    h = jnp.dot(emb, w1_ref[...], preferred_element_type=jnp.float32) + b1_ref[...]
    h = h * jax.nn.sigmoid(h)                             # SiLU (sigmoid on EUP), f32
    out = jnp.dot(h.astype(jnp.bfloat16), w2_ref[...],
                  preferred_element_type=jnp.float32) + b2_ref[...]

    o_ref[...] = out.astype(o_ref.dtype)


# ------------------------------ wrapper --------------------------------------

def _round_up(x, m):
    return ((x + m - 1) // m) * m


def timestep_embedder(t, params, *, frequency_embedding_size=256,
                      max_period=10000, block_b=256, out_dtype=jnp.float32):
    """t: (B,) float timesteps.  Returns (B, H) embeddings."""
    B = t.shape[0]
    F = frequency_embedding_size
    assert F % 2 == 0, "odd frequency_embedding_size not supported"
    half = F // 2
    H = params["w1"].shape[1]

    LANE = 128   # lane width: output / MXU-N dim padded to this
    SUB = 16     # sublane alignment safe for both f32 and bf16 tiles
    Hp = _round_up(H, LANE)

    # batch tile: multiple of 16 sublanes, no bigger than the (padded) batch
    bb = min(_round_up(block_b, SUB), _round_up(B, SUB))
    Bp = _round_up(B, bb)

    t_pad = jnp.zeros((Bp, 1), jnp.float32).at[:B, 0].set(t.astype(jnp.float32))

    # host-side constants (computed once, not per grid step)
    freqs = jnp.exp(
        -math.log(max_period) * jnp.arange(half, dtype=jnp.float32) / half
    )
    freqs_full = jnp.concatenate([freqs, freqs])[None, :]                 # (1, F)
    phase = jnp.concatenate(
        [jnp.full((half,), jnp.pi / 2, jnp.float32),
         jnp.zeros((half,), jnp.float32)])[None, :]                       # (1, F)

    # weights in bf16 (halves weight DMA), padded to lane-dense Hp; biases f32.
    w1 = jnp.zeros((F, Hp), jnp.bfloat16).at[:, :H].set(
        params["w1"].astype(jnp.bfloat16))
    w2 = jnp.zeros((Hp, Hp), jnp.bfloat16).at[:H, :H].set(
        params["w2"].astype(jnp.bfloat16))
    b1 = jnp.zeros((1, Hp), jnp.float32).at[:, :H].set(
        params["b1"].astype(jnp.float32))
    b2 = jnp.zeros((1, Hp), jnp.float32).at[:, :H].set(
        params["b2"].astype(jnp.float32))

    # constant blocks (same index every step): single-buffer to save VMEM (v7x)
    const = dict(pipeline_mode=pl.Buffered(1))

    out = pl.pallas_call(
        timestep_embedder_kernel,
        out_shape=jax.ShapeDtypeStruct((Bp, Hp), out_dtype),
        grid_spec=pltpu.PrefetchScalarGridSpec(
            num_scalar_prefetch=0,
            grid=(Bp // bb,),
            in_specs=[
                pl.BlockSpec((bb, 1), lambda i: (i, 0)),            # t
                pl.BlockSpec((1, F), lambda i: (0, 0), **const),    # freqs
                pl.BlockSpec((1, F), lambda i: (0, 0), **const),    # phase
                pl.BlockSpec((F, Hp), lambda i: (0, 0), **const),   # w1
                pl.BlockSpec((1, Hp), lambda i: (0, 0), **const),   # b1
                pl.BlockSpec((Hp, Hp), lambda i: (0, 0), **const),  # w2
                pl.BlockSpec((1, Hp), lambda i: (0, 0), **const),   # b2
            ],
            out_specs=pl.BlockSpec((bb, Hp), lambda i: (i, 0)),
        ),
        compiler_params=pltpu.CompilerParams(
            dimension_semantics=("parallel",),
        ),
    )(t_pad, freqs_full, phase, w1, b1, w2, b2)

    return out[:B, :H]


# ---------------------- pure-JAX reference (for checking) --------------------

def timestep_embedder_ref(t, params, *, frequency_embedding_size=256, max_period=10000):
    half = frequency_embedding_size // 2
    freqs = jnp.exp(
        -math.log(max_period) * jnp.arange(half, dtype=jnp.float32) / half
    )
    args = t[:, None].astype(jnp.float32) * freqs[None]
    emb = jnp.concatenate([jnp.cos(args), jnp.sin(args)], axis=-1)
    h = emb @ params["w1"] + params["b1"][0]
    h = h * jax.nn.sigmoid(h)
    return h @ params["w2"] + params["b2"][0]


# -------------------------------- main ----------------------------------------

if __name__ == "__main__":
    B = 2
    H = 32                      # hidden_size
    F = 256                     # frequency_embedding_size (module default)

    key = jax.random.PRNGKey(0)
    k0, k1, k2, k3, k4, _ = jax.random.split(key, 6)

    # weights pre-transposed to (in, out) so the kernel does y = x @ W + b
    params = {
        "w1": 0.05 * jax.random.normal(k0, (F, H), jnp.float32),
        "b1": 0.01 * jax.random.normal(k1, (1, H), jnp.float32),
        "w2": 0.05 * jax.random.normal(k2, (H, H), jnp.float32),
        "b2": 0.01 * jax.random.normal(k3, (1, H), jnp.float32),
    }

    # fractional diffusion timesteps in [0, 1000)
    t = jax.random.uniform(k4, (B,), jnp.float32, minval=0.0, maxval=1000.0)

    out = timestep_embedder(t, params, frequency_embedding_size=F)
    out = jax.block_until_ready(out)

    ref = timestep_embedder_ref(t, params, frequency_embedding_size=F)
    assert out.shape == (B, H)
    # bf16 MXU operands -> compare at bf16-appropriate tolerance
    assert jnp.allclose(out, ref, atol=2e-2, rtol=2e-2), "mismatch vs JAX reference"

    print("KERNEL_OK")
</pallas_src>

<mosaic_0001>
module attributes {stable_mosaic.version = 11 : i64} {
  func.func @timestep_embedder_kernel(%arg0: i32, %arg1: memref<16x1xf32, #tpu.memory_space<vmem>>, %arg2: memref<1x256xf32, #tpu.memory_space<vmem>>, %arg3: memref<1x256xf32, #tpu.memory_space<vmem>>, %arg4: memref<256x128xbf16, #tpu.memory_space<vmem>>, %arg5: memref<1x128xf32, #tpu.memory_space<vmem>>, %arg6: memref<128x128xbf16, #tpu.memory_space<vmem>>, %arg7: memref<1x128xf32, #tpu.memory_space<vmem>>, %arg8: memref<16x128xf32, #tpu.memory_space<vmem>>) attributes {dimension_semantics = [#tpu.dimension_semantics<parallel>], iteration_bounds = array<i64: 1>, scalar_prefetch = 0 : i64, scratch_operands = 0 : i64, tpu.core_type = #tpu.core_type<tc>, window_params = [{transform_indices = @transform_0, window_bounds = array<i64: 16, 1>}, {pipeline_mode = #tpu.pipeline_mode<synchronous>, transform_indices = @transform_1, window_bounds = array<i64: 1, 256>}, {pipeline_mode = #tpu.pipeline_mode<synchronous>, transform_indices = @transform_2, window_bounds = array<i64: 1, 256>}, {pipeline_mode = #tpu.pipeline_mode<synchronous>, transform_indices = @transform_3, window_bounds = array<i64: 256, 128>}, {pipeline_mode = #tpu.pipeline_mode<synchronous>, transform_indices = @transform_4, window_bounds = array<i64: 1, 128>}, {pipeline_mode = #tpu.pipeline_mode<synchronous>, transform_indices = @transform_5, window_bounds = array<i64: 128, 128>}, {pipeline_mode = #tpu.pipeline_mode<synchronous>, transform_indices = @transform_6, window_bounds = array<i64: 1, 128>}, {transform_indices = @transform_7, window_bounds = array<i64: 16, 128>}]} {
    %c0 = arith.constant 0 : index
    %c0_0 = arith.constant 0 : index
    %0 = vector.load %arg1[%c0, %c0_0] : memref<16x1xf32, #tpu.memory_space<vmem>>, vector<16x1xf32>
    %c0_1 = arith.constant 0 : index
    %c0_2 = arith.constant 0 : index
    %1 = vector.load %arg2[%c0_1, %c0_2] : memref<1x256xf32, #tpu.memory_space<vmem>>, vector<1x256xf32>
    %2 = vector.broadcast %0 : vector<16x1xf32> to vector<16x256xf32>
    %3 = vector.broadcast %1 : vector<1x256xf32> to vector<16x256xf32>
    %4 = arith.mulf %2, %3 : vector<16x256xf32>
    %c0_3 = arith.constant 0 : index
    %c0_4 = arith.constant 0 : index
    %5 = vector.load %arg3[%c0_3, %c0_4] : memref<1x256xf32, #tpu.memory_space<vmem>>, vector<1x256xf32>
    %6 = vector.broadcast %5 : vector<1x256xf32> to vector<16x256xf32>
    %7 = arith.addf %4, %6 : vector<16x256xf32>
    %8 = math.sin %7 : vector<16x256xf32>
    %9 = arith.truncf %8 : vector<16x256xf32> to vector<16x256xbf16>
    %c0_5 = arith.constant 0 : index
    %c0_6 = arith.constant 0 : index
    %10 = vector.load %arg4[%c0_5, %c0_6] : memref<256x128xbf16, #tpu.memory_space<vmem>>, vector<256x128xbf16>
    %cst = arith.constant dense<0.000000e+00> : vector<16x128xf32>
    %11 = tpu.matmul %9, %10, %cst {dimension_numbers = #tpu.dot_dimension_numbers<[1], [0], [0], [1], [0, 0, 1, 1], [], []>} : vector<16x256xbf16>, vector<256x128xbf16>, vector<16x128xf32> -> vector<16x128xf32>
    %c0_7 = arith.constant 0 : index
    %c0_8 = arith.constant 0 : index
    %12 = vector.load %arg5[%c0_7, %c0_8] : memref<1x128xf32, #tpu.memory_space<vmem>>, vector<1x128xf32>
    %13 = vector.broadcast %12 : vector<1x128xf32> to vector<16x128xf32>
    %14 = arith.addf %11, %13 : vector<16x128xf32>
    %15 = arith.negf %14 : vector<16x128xf32>
    %16 = math.exp %15 : vector<16x128xf32>
    %cst_9 = arith.constant 1.000000e+00 : f32
    %17 = vector.broadcast %cst_9 : f32 to vector<16x128xf32>
    %18 = arith.addf %17, %16 : vector<16x128xf32>
    %19 = arith.divf %17, %18 : vector<16x128xf32>
    %20 = arith.mulf %14, %19 : vector<16x128xf32>
    %21 = arith.truncf %20 : vector<16x128xf32> to vector<16x128xbf16>
    %c0_10 = arith.constant 0 : index
    %c0_11 = arith.constant 0 : index
    %22 = vector.load %arg6[%c0_10, %c0_11] : memref<128x128xbf16, #tpu.memory_space<vmem>>, vector<128x128xbf16>
    %cst_12 = arith.constant dense<0.000000e+00> : vector<16x128xf32>
    %23 = tpu.matmul %21, %22, %cst_12 {dimension_numbers = #tpu.dot_dimension_numbers<[1], [0], [0], [1], [0, 0, 1, 1], [], []>} : vector<16x128xbf16>, vector<128x128xbf16>, vector<16x128xf32> -> vector<16x128xf32>
    %c0_13 = arith.constant 0 : index
    %c0_14 = arith.constant 0 : index
    %24 = vector.load %arg7[%c0_13, %c0_14] : memref<1x128xf32, #tpu.memory_space<vmem>>, vector<1x128xf32>
    %25 = vector.broadcast %24 : vector<1x128xf32> to vector<16x128xf32>
    %26 = arith.addf %23, %25 : vector<16x128xf32>
    %c0_15 = arith.constant 0 : index
    %c0_16 = arith.constant 0 : index
    %27 = vector.load %arg8[%c0_15, %c0_16] : memref<16x128xf32, #tpu.memory_space<vmem>>, vector<16x128xf32>
    tpu.vector_store %arg8[%c0_15, %c0_16], %26 {strides = array<i32>} : memref<16x128xf32, #tpu.memory_space<vmem>>, vector<16x128xf32>,
    return
  }
  func.func @transform_0(%arg0: i32) -> (i32, i32) {
    %c0_i32 = arith.constant 0 : i32
    %c0_i32_0 = arith.constant 0 : i32
    return %arg0, %c0_i32 : i32, i32
  }
  func.func @transform_1(%arg0: i32) -> (i32, i32) {
    %c0_i32 = arith.constant 0 : i32
    %c0_i32_0 = arith.constant 0 : i32
    %c0_i32_1 = arith.constant 0 : i32
    return %c0_i32, %c0_i32_0 : i32, i32
  }
  func.func @transform_2(%arg0: i32) -> (i32, i32) {
    %c0_i32 = arith.constant 0 : i32
    %c0_i32_0 = arith.constant 0 : i32
    %c0_i32_1 = arith.constant 0 : i32
    return %c0_i32, %c0_i32_0 : i32, i32
  }
  func.func @transform_3(%arg0: i32) -> (i32, i32) {
    %c0_i32 = arith.constant 0 : i32
    %c0_i32_0 = arith.constant 0 : i32
    %c0_i32_1 = arith.constant 0 : i32
    return %c0_i32, %c0_i32_0 : i32, i32
  }
  func.func @transform_4(%arg0: i32) -> (i32, i32) {
    %c0_i32 = arith.constant 0 : i32
    %c0_i32_0 = arith.constant 0 : i32
    %c0_i32_1 = arith.constant 0 : i32
    return %c0_i32, %c0_i32_0 : i32, i32
  }
  func.func @transform_5(%arg0: i32) -> (i32, i32) {
    %c0_i32 = arith.constant 0 : i32
    %c0_i32_0 = arith.constant 0 : i32
    %c0_i32_1 = arith.constant 0 : i32
    return %c0_i32, %c0_i32_0 : i32, i32
  }
  func.func @transform_6(%arg0: i32) -> (i32, i32) {
    %c0_i32 = arith.constant 0 : i32
    %c0_i32_0 = arith.constant 0 : i32
    %c0_i32_1 = arith.constant 0 : i32
    return %c0_i32, %c0_i32_0 : i32, i32
  }
  func.func @transform_7(%arg0: i32) -> (i32, i32) {
    %c0_i32 = arith.constant 0 : i32
    %c0_i32_0 = arith.constant 0 : i32
    return %arg0, %c0_i32 : i32, i32
  }
}

</mosaic_0001>

<llo_original>
// kernel: tpu_custom_call.1
$region0: #{tpu_custom_call.1}
  #allocation0 [shape = 'u32[]', space=smem, size = 0x4, offset = 0x4, fixed_abs, tag = 'smem constant byte address 0x4 - core index']
  #allocation1 [shape = 'u32[144,128]{1,0:T(1,128)}', space=vmem, size = 0x12000, scoped, tag = 'internal scratch']
  %s0 = inlined_call_operand.vmem [shape: f32[16,1], index: 0, kind: input, shape index: {}]
  %s1 = inlined_call_operand.vmem [shape: f32[1,256], index: 1, kind: input, shape index: {}]
  %s2 = inlined_call_operand.vmem [shape: f32[1,256], index: 2, kind: input, shape index: {}]
  %s3 = inlined_call_operand.hbm [shape: bf16[256,128], index: 3, kind: input, shape index: {}]
  %s4 = inlined_call_operand.vmem [shape: f32[1,128], index: 4, kind: input, shape index: {}]
  %s5 = inlined_call_operand.hbm [shape: bf16[128,128], index: 5, kind: input, shape index: {}]
  %s6 = inlined_call_operand.vmem [shape: f32[1,128], index: 6, kind: input, shape index: {}]
  %s7 = inlined_call_operand.hbm [shape: f32[16,128], index: 7, kind: output, shape index: {}]
  %s8 = sld [smem:[#allocation0]]
  $region46: #{tpu_custom_call.1} parent=0
    _
  %s10 = ssub.s32 1, %s8
  %s11 = scalar_select 0, %s10, %s8
  $region1: #{tpu_custom_call.1} parent=0
    #allocation2 [shape = 'u8[65536]{0}', space=vmem, size = 0x10000, scoped, tag = 'input window, operand 3, single buffered']
    #allocation3 [shape = 's32[1]{0}', space=sflag, size = 0x4, scoped, tag = 'scoped memory for tpu_custom_call.1']
    #allocation4 [shape = 's32[1]{0}', space=sflag, size = 0x4, scoped, tag = 'scoped memory for tpu_custom_call.1']
    #allocation5 [shape = 'u8[32768]{0}', space=vmem, size = 0x8000, scoped, tag = 'input window, operand 5, single buffered']
    #allocation6 [shape = 's32[1]{0}', space=sflag, size = 0x4, scoped, tag = 'scoped memory for tpu_custom_call.1']
    #allocation7 [shape = 'u8[8192]{0}', space=vmem, size = 0x2000, scoped, tag = 'output window, operand 0, single buffered']
    %12 = vsyncpa [#allocation3], 0
    %13 = vsyncpa [#allocation6], 0
    %14 = vsyncpa [#allocation4], 0
    // Predicated region
    $region2: #{tpu_custom_call.1} parent=1 // pred_check
      _
    $region3: #{tpu_custom_call.1} parent=1 // pred_check_branch
      %16 = sbr.rel (0) target = $region5
    $region4: #{tpu_custom_call.1} parent=1 // pred_region
      _
    $region5: #{tpu_custom_call.1} parent=1 // pred_fallthru
      _
    // Predicated region
    $region6: #{tpu_custom_call.1} parent=1 // pred_check
      _
    $region7: #{tpu_custom_call.1} parent=1 // pred_check_branch
      %18 = sbr.rel (0) target = $region9
    $region8: #{tpu_custom_call.1} parent=1 // pred_region
      _
    $region9: #{tpu_custom_call.1} parent=1 // pred_fallthru
      _
    // Predicated region
    $region10: #{tpu_custom_call.1} parent=1 // pred_check
      _
    $region11: #{tpu_custom_call.1} parent=1 // pred_check_branch
      %20 = sbr.rel (0) target = $region13
    $region12: #{tpu_custom_call.1} parent=1 // pred_region
      _
    $region13: #{tpu_custom_call.1} parent=1 // pred_fallthru
      _
    // Predicated region
    $region14: #{tpu_custom_call.1} parent=1 // pred_check
      _
    $region15: #{tpu_custom_call.1} parent=1 // pred_check_branch
      %22 = sbr.rel (0) target = $region17
    $region16: #{tpu_custom_call.1} parent=1 // pred_region
      %s24 = ssub.s32 2048, 2048
      %25 = vsyncadd [#allocation3], %s24
      %s26 = sshll.u32 [#allocation2], 4
      %s27 = int_to_ptr.vmem [resolvable:$true] %s26
      %32 = dma.hbm_to_vmem [thread:$0]  %s3, 2048, %s27, [#allocation3], 64, 64, 4
    $region17: #{tpu_custom_call.1} parent=1 // pred_fallthru
      _
    // Predicated region
    $region18: #{tpu_custom_call.1} parent=1 // pred_check
      _
    $region19: #{tpu_custom_call.1} parent=1 // pred_check_branch
      %34 = sbr.rel (0) target = $region21
    $region20: #{tpu_custom_call.1} parent=1 // pred_region
      _
    $region21: #{tpu_custom_call.1} parent=1 // pred_fallthru
      _
    // Predicated region
    $region22: #{tpu_custom_call.1} parent=1 // pred_check
      _
    $region23: #{tpu_custom_call.1} parent=1 // pred_check_branch
      %36 = sbr.rel (0) target = $region25
    $region24: #{tpu_custom_call.1} parent=1 // pred_region
      %s38 = ssub.s32 1024, 1024
      %39 = vsyncadd [#allocation6], %s38
      %s40 = sshll.u32 [#allocation5], 4
      %s41 = int_to_ptr.vmem [resolvable:$true] %s40
      %46 = dma.hbm_to_vmem [thread:$0]  %s5, 1024, %s41, [#allocation6], 64, 64, 4
    $region25: #{tpu_custom_call.1} parent=1 // pred_fallthru
      _
    // Predicated region
    $region26: #{tpu_custom_call.1} parent=1 // pred_check
      _
    $region27: #{tpu_custom_call.1} parent=1 // pred_check_branch
      %48 = sbr.rel (0) target = $region29
    $region28: #{tpu_custom_call.1} parent=1 // pred_region
      _
    $region29: #{tpu_custom_call.1} parent=1 // pred_fallthru
      _
    // Predicated region
    $region30: #{tpu_custom_call.1} parent=1 // pred_check
      _
    $region31: #{tpu_custom_call.1} parent=1 // pred_check_branch
      %50 = sbr.rel (0) target = $region33
    $region32: #{tpu_custom_call.1} parent=1 // pred_region
      %51 = dma.done [#allocation3], 2048
    $region33: #{tpu_custom_call.1} parent=1 // pred_fallthru
      _
    // Predicated region
    $region34: #{tpu_custom_call.1} parent=1 // pred_check
      _
    $region35: #{tpu_custom_call.1} parent=1 // pred_check_branch
      %53 = sbr.rel (0) target = $region37
    $region36: #{tpu_custom_call.1} parent=1 // pred_region
      %54 = dma.done [#allocation6], 1024
    $region37: #{tpu_custom_call.1} parent=1 // pred_fallthru
      _
    %v56 = vld [vmem:[%s0] sm:$0xff]
    %v57 = vld [vmem:[%s0 + $0x8] sm:$0xff]
    %v58 = vld [vmem:[%s1] sm:$0x3]
    %60 = vset.pattern.permute.xlu0 0
    %61 = vperm.xlu0 %60, %v56
    %v62 = vpop.permute.xlu0 %61
    %65 = vset.pattern.permute.xlu0 0
    %66 = vperm.xlu0 %65, %v57
    %v67 = vpop.permute.xlu0 %66
    %v70 = vlaneseq
    %v71 = vshrl.u32 %v70, 7
    %v72 = vsub.s32 0, %v71
    %v73 = vrot.slane %v58, %v72
    %v74 = vlaneseq
    %v75 = vshrl.u32 %v74, 7
    %v76 = vsub.s32 1, %v75
    %v77 = vrot.slane %v58, %v76
    %v80 = vmul.f32 %v62, %v73
    %v81 = vmul.f32 %v62, %v77
    %v82 = vmul.f32 %v67, %v73
    %v83 = vmul.f32 %v67, %v77
    %v84 = vld [vmem:[%s2] sm:$0x3]
    %v86 = vlaneseq
    %v87 = vshrl.u32 %v86, 7
    %v88 = vsub.s32 0, %v87
    %v89 = vrot.slane %v84, %v88
    %v90 = vlaneseq
    %v91 = vshrl.u32 %v90, 7
    %v92 = vsub.s32 1, %v91
    %v93 = vrot.slane %v84, %v92
    %v96 = vadd.f32 %v80, %v89
    %v97 = vadd.f32 %v81, %v93
    %v98 = vadd.f32 %v82, %v89
    %v99 = vadd.f32 %v83, %v93
    %v100 = vand.u32 2147483647, %v96
    %vm101 = vcmp.le.f32.partialorder %v100, 0.7853982
    %vm102 = vcmp.lt.s32.totalorder %v96, 0
    %v103 = vand.u32 %v96, 2139095040
    %v104 = vshrl.u32 %v103, 23
    %v105 = vsub.s32 %v104, 127
    %v106 = vand.u32 2147483647, %v96
    %v107 = vand.u32 %v106, 8388607
    %v108 = vor.u32 %v107, 8388608
    %v109 = vsub.s32 0, %v108
    %v110 = vadd.s32 %v105, 1
    %vm111 = vcmp.gt.s32.totalorder %v110, 0
    %v112 = vsel %vm111, %v110, 0
    %v113 = vshrl.u32 %v112, 5
    %v114 = vand.u32 %v112, 31
    %v115 = vsub.s32 32, %v114
    %v116 = vshrl.u32 683565275, %v115
    %v117 = vshll.u32 683565275, %v114
    %v118 = vshrl.u32 2475754826, %v115
    %v119 = vor.u32 %v117, %v118
    %v120 = vshll.u32 2475754826, %v114
    %v121 = vshrl.u32 2131351028, %v115
    %v122 = vor.u32 %v120, %v121
    %v123 = vshll.u32 2131351028, %v114
    %v124 = vshrl.u32 2102212464, %v115
    %v125 = vor.u32 %v123, %v124
    %v126 = vshll.u32 2102212464, %v114
    %v127 = vshrl.u32 920167782, %v115
    %v128 = vor.u32 %v126, %v127
    %v129 = vshll.u32 920167782, %v114
    %v130 = vshrl.u32 1326507024, %v115
    %v131 = vor.u32 %v129, %v130
    %vm132 = vcmp.lt.s32.totalorder %v113, 1
    %vm133 = vcmp.lt.s32.totalorder %v113, 2
    %vm134 = vcmp.lt.s32.totalorder %v113, 3
    %vm135 = vcmp.lt.s32.totalorder %v113, 4
    %v136 = vsel %vm132, %v116, %v119
    %v137 = vsel %vm135, %v125, 2102212464
    %v138 = vsel %vm134, %v122, %v137
    %v139 = vsel %vm133, %v136, %v138
    %v140 = vsel %vm132, %v119, %v122
    %v141 = vsel %vm135, %v128, 920167782
    %v142 = vsel %vm134, %v125, %v141
    %v143 = vsel %vm133, %v140, %v142
    %v144 = vsel %vm132, %v122, %v125
    %v145 = vsel %vm135, %v131, 1326507024
    %v146 = vsel %vm134, %v128, %v145
    %v147 = vsel %vm133, %v144, %v146
    %v148 = vshll.u32 %v108, 8
    %v149 = vmul.u32.u64.compose %v148, %v147
    %v150 = vextract.low.u32 %v149
    %v151 = vextract.high.u32 %v149
    %v152 = vmul.u32.u64.compose %v148, %v143
    %v153 = vextract.low.u32 %v152
    %v154 = vextract.high.u32 %v152
    %v155 = vmul.u32 %v148, %v139
    %v156 = vadd.s32 %v151, %v153
    %vm157 = vc.u32 %v151, %v153
    %v158 = vadd.s32 %v154, 1
    %v159 = vsel %vm157, %v158, %v154
    %v160 = vadd.s32 %v155, %v159
    %v161 = vadd.s32 %v160, 536870912
    %v162 = vshrl.u32 %v161, 30
    %v163 = vshll.u32 %v162, 30
    %v164 = vsub.s32 %v160, %v163
    %vm165 = vcmp.lt.s32.totalorder %v164, 0
    %v166 = vsub.s32 0, %v164
    %v167 = vsel %vm165, %v166, %v164
    %v168 = vclz %v167
    %v169 = vsub.s32 %v168, 2
    %vm170 = vcmp.gt.s32.totalorder 0, %v169
    %v171 = vsel %vm170, 0, %v169
    %v172 = vsub.s32 32, %v171
    %v173 = vshll.u32 %v164, %v171
    %v174 = vshrl.u32 %v156, %v172
    %v175 = vor.u32 %v173, %v174
    %v176 = vsub.s32 4294967266, %v171
    %v177 = vadd.s32 %v176, 127
    %v178 = vshll.u32 %v177, 23
    %v179 = vor.u32 4788187, %v178
    %v180 = vand.u32 2147483647, %v179
    %v182 = vcvt.s32.f32 %v175
    %v183 = vmul.f32 %v182, %v180
    %v184 = vxor.u32 %v183, 2147483648
    %v185 = vsel %vm102, %v184, %v183
    %v186 = vsub.s32 4, %v162
    %v187 = vsel %vm102, %v186, %v162
    %v188 = vsel %vm101, %v96, %v185
    %v189 = vsel %vm101, 0, %v187
    %v190 = vcosq.f32.pop %v188
    %v191 = vsinq.f32.pop %v188
    %vm192 = vweird.f32 %v96
    %v193 = vadd.s32 %v189, 3
    %v194 = vand.u32 %v193, 3
    %vm195 = vcmp.lt.s32.totalorder %v194, 2
    %vm196 = vcmp.eq.s32.totalorder %v194, 0
    %v197 = vxor.u32 %v191, 2147483648
    %v198 = vsel %vm196, %v190, %v197
    %vm199 = vcmp.eq.s32.totalorder %v194, 2
    %v200 = vxor.u32 %v190, 2147483648
    %v201 = vsel %vm199, %v200, %v191
    %v202 = vsel %vm195, %v198, %v201
    %v203 = vsel %vm192, nan, %v202
    %v204 = vand.u32 2147483647, %v97
    %vm205 = vcmp.le.f32.partialorder %v204, 0.7853982
    %vm206 = vcmp.lt.s32.totalorder %v97, 0
    %v207 = vand.u32 %v97, 2139095040
    %v208 = vshrl.u32 %v207, 23
    %v209 = vsub.s32 %v208, 127
    %v210 = vand.u32 2147483647, %v97
    %v211 = vand.u32 %v210, 8388607
    %v212 = vor.u32 %v211, 8388608
    %v213 = vsub.s32 0, %v212
    %v214 = vadd.s32 %v209, 1
    %vm215 = vcmp.gt.s32.totalorder %v214, 0
    %v216 = vsel %vm215, %v214, 0
    %v217 = vshrl.u32 %v216, 5
    %v218 = vand.u32 %v216, 31
    %v219 = vsub.s32 32, %v218
    %v220 = vshrl.u32 683565275, %v219
    %v221 = vshll.u32 683565275, %v218
    %v222 = vshrl.u32 2475754826, %v219
    %v223 = vor.u32 %v221, %v222
    %v224 = vshll.u32 2475754826, %v218
    %v225 = vshrl.u32 2131351028, %v219
    %v226 = vor.u32 %v224, %v225
    %v227 = vshll.u32 2131351028, %v218
    %v228 = vshrl.u32 2102212464, %v219
    %v229 = vor.u32 %v227, %v228
    %v230 = vshll.u32 2102212464, %v218
    %v231 = vshrl.u32 920167782, %v219
    %v232 = vor.u32 %v230, %v231
    %v233 = vshll.u32 920167782, %v218
    %v234 = vshrl.u32 1326507024, %v219
    %v235 = vor.u32 %v233, %v234
    %vm236 = vcmp.lt.s32.totalorder %v217, 1
    %vm237 = vcmp.lt.s32.totalorder %v217, 2
    %vm238 = vcmp.lt.s32.totalorder %v217, 3
    %vm239 = vcmp.lt.s32.totalorder %v217, 4
    %v240 = vsel %vm236, %v220, %v223
    %v241 = vsel %vm239, %v229, 2102212464
    %v242 = vsel %vm238, %v226, %v241
    %v243 = vsel %vm237, %v240, %v242
    %v244 = vsel %vm236, %v223, %v226
    %v245 = vsel %vm239, %v232, 920167782
    %v246 = vsel %vm238, %v229, %v245
    %v247 = vsel %vm237, %v244, %v246
    %v248 = vsel %vm236, %v226, %v229
    %v249 = vsel %vm239, %v235, 1326507024
    %v250 = vsel %vm238, %v232, %v249
    %v251 = vsel %vm237, %v248, %v250
    %v252 = vshll.u32 %v212, 8
    %v253 = vmul.u32.u64.compose %v252, %v251
    %v254 = vextract.low.u32 %v253
    %v255 = vextract.high.u32 %v253
    %v256 = vmul.u32.u64.compose %v252, %v247
    %v257 = vextract.low.u32 %v256
    %v258 = vextract.high.u32 %v256
    %v259 = vmul.u32 %v252, %v243
    %v260 = vadd.s32 %v255, %v257
    %vm261 = vc.u32 %v255, %v257
    %v262 = vadd.s32 %v258, 1
    %v263 = vsel %vm261, %v262, %v258
    %v264 = vadd.s32 %v259, %v263
    %v265 = vadd.s32 %v264, 536870912
    %v266 = vshrl.u32 %v265, 30
    %v267 = vshll.u32 %v266, 30
    %v268 = vsub.s32 %v264, %v267
    %vm269 = vcmp.lt.s32.totalorder %v268, 0
    %v270 = vsub.s32 0, %v268
    %v271 = vsel %vm269, %v270, %v268
    %v272 = vclz %v271
    %v273 = vsub.s32 %v272, 2
    %vm274 = vcmp.gt.s32.totalorder 0, %v273
    %v275 = vsel %vm274, 0, %v273
    %v276 = vsub.s32 32, %v275
    %v277 = vshll.u32 %v268, %v275
    %v278 = vshrl.u32 %v260, %v276
    %v279 = vor.u32 %v277, %v278
    %v280 = vsub.s32 4294967266, %v275
    %v281 = vadd.s32 %v280, 127
    %v282 = vshll.u32 %v281, 23
    %v283 = vor.u32 4788187, %v282
    %v284 = vand.u32 2147483647, %v283
    %v286 = vcvt.s32.f32 %v279
    %v287 = vmul.f32 %v286, %v284
    %v288 = vxor.u32 %v287, 2147483648
    %v289 = vsel %vm206, %v288, %v287
    %v290 = vsub.s32 4, %v266
    %v291 = vsel %vm206, %v290, %v266
    %v292 = vsel %vm205, %v97, %v289
    %v293 = vsel %vm205, 0, %v291
    %v294 = vcosq.f32.pop %v292
    %v295 = vsinq.f32.pop %v292
    %vm296 = vweird.f32 %v97
    %v297 = vadd.s32 %v293, 3
    %v298 = vand.u32 %v297, 3
    %vm299 = vcmp.lt.s32.totalorder %v298, 2
    %vm300 = vcmp.eq.s32.totalorder %v298, 0
    %v301 = vxor.u32 %v295, 2147483648
    %v302 = vsel %vm300, %v294, %v301
    %vm303 = vcmp.eq.s32.totalorder %v298, 2
    %v304 = vxor.u32 %v294, 2147483648
    %v305 = vsel %vm303, %v304, %v295
    %v306 = vsel %vm299, %v302, %v305
    %v307 = vsel %vm296, nan, %v306
    %v308 = vand.u32 2147483647, %v98
    %vm309 = vcmp.le.f32.partialorder %v308, 0.7853982
    %vm310 = vcmp.lt.s32.totalorder %v98, 0
    %v311 = vand.u32 %v98, 2139095040
    %v312 = vshrl.u32 %v311, 23
    %v313 = vsub.s32 %v312, 127
    %v314 = vand.u32 2147483647, %v98
    %v315 = vand.u32 %v314, 8388607
    %v316 = vor.u32 %v315, 8388608
    %v317 = vsub.s32 0, %v316
    %v318 = vadd.s32 %v313, 1
    %vm319 = vcmp.gt.s32.totalorder %v318, 0
    %v320 = vsel %vm319, %v318, 0
    %v321 = vshrl.u32 %v320, 5
    %v322 = vand.u32 %v320, 31
    %v323 = vsub.s32 32, %v322
    %v324 = vshrl.u32 683565275, %v323
    %v325 = vshll.u32 683565275, %v322
    %v326 = vshrl.u32 2475754826, %v323
    %v327 = vor.u32 %v325, %v326
    %v328 = vshll.u32 2475754826, %v322
    %v329 = vshrl.u32 2131351028, %v323
    %v330 = vor.u32 %v328, %v329
    %v331 = vshll.u32 2131351028, %v322
    %v332 = vshrl.u32 2102212464, %v323
    %v333 = vor.u32 %v331, %v332
    %v334 = vshll.u32 2102212464, %v322
    %v335 = vshrl.u32 920167782, %v323
    %v336 = vor.u32 %v334, %v335
    %v337 = vshll.u32 920167782, %v322
    %v338 = vshrl.u32 1326507024, %v323
    %v339 = vor.u32 %v337, %v338
    %vm340 = vcmp.lt.s32.totalorder %v321, 1
    %vm341 = vcmp.lt.s32.totalorder %v321, 2
    %vm342 = vcmp.lt.s32.totalorder %v321, 3
    %vm343 = vcmp.lt.s32.totalorder %v321, 4
    %v344 = vsel %vm340, %v324, %v327
    %v345 = vsel %vm343, %v333, 2102212464
    %v346 = vsel %vm342, %v330, %v345
    %v347 = vsel %vm341, %v344, %v346
    %v348 = vsel %vm340, %v327, %v330
    %v349 = vsel %vm343, %v336, 920167782
    %v350 = vsel %vm342, %v333, %v349
    %v351 = vsel %vm341, %v348, %v350
    %v352 = vsel %vm340, %v330, %v333
    %v353 = vsel %vm343, %v339, 1326507024
    %v354 = vsel %vm342, %v336, %v353
    %v355 = vsel %vm341, %v352, %v354
    %v356 = vshll.u32 %v316, 8
    %v357 = vmul.u32.u64.compose %v356, %v355
    %v358 = vextract.low.u32 %v357
    %v359 = vextract.high.u32 %v357
    %v360 = vmul.u32.u64.compose %v356, %v351
    %v361 = vextract.low.u32 %v360
    %v362 = vextract.high.u32 %v360
    %v363 = vmul.u32 %v356, %v347
    %v364 = vadd.s32 %v359, %v361
    %vm365 = vc.u32 %v359, %v361
    %v366 = vadd.s32 %v362, 1
    %v367 = vsel %vm365, %v366, %v362
    %v368 = vadd.s32 %v363, %v367
    %v369 = vadd.s32 %v368, 536870912
    %v370 = vshrl.u32 %v369, 30
    %v371 = vshll.u32 %v370, 30
    %v372 = vsub.s32 %v368, %v371
    %vm373 = vcmp.lt.s32.totalorder %v372, 0
    %v374 = vsub.s32 0, %v372
    %v375 = vsel %vm373, %v374, %v372
    %v376 = vclz %v375
    %v377 = vsub.s32 %v376, 2
    %vm378 = vcmp.gt.s32.totalorder 0, %v377
    %v379 = vsel %vm378, 0, %v377
    %v380 = vsub.s32 32, %v379
    %v381 = vshll.u32 %v372, %v379
    %v382 = vshrl.u32 %v364, %v380
    %v383 = vor.u32 %v381, %v382
    %v384 = vsub.s32 4294967266, %v379
    %v385 = vadd.s32 %v384, 127
    %v386 = vshll.u32 %v385, 23
    %v387 = vor.u32 4788187, %v386
    %v388 = vand.u32 2147483647, %v387
    %v390 = vcvt.s32.f32 %v383
    %v391 = vmul.f32 %v390, %v388
    %v392 = vxor.u32 %v391, 2147483648
    %v393 = vsel %vm310, %v392, %v391
    %v394 = vsub.s32 4, %v370
    %v395 = vsel %vm310, %v394, %v370
    %v396 = vsel %vm309, %v98, %v393
    %v397 = vsel %vm309, 0, %v395
    %v398 = vcosq.f32.pop %v396
    %v399 = vsinq.f32.pop %v396
    %vm400 = vweird.f32 %v98
    %v401 = vadd.s32 %v397, 3
    %v402 = vand.u32 %v401, 3
    %vm403 = vcmp.lt.s32.totalorder %v402, 2
    %vm404 = vcmp.eq.s32.totalorder %v402, 0
    %v405 = vxor.u32 %v399, 2147483648
    %v406 = vsel %vm404, %v398, %v405
    %vm407 = vcmp.eq.s32.totalorder %v402, 2
    %v408 = vxor.u32 %v398, 2147483648
    %v409 = vsel %vm407, %v408, %v399
    %v410 = vsel %vm403, %v406, %v409
    %v411 = vsel %vm400, nan, %v410
    %v412 = vand.u32 2147483647, %v99
    %vm413 = vcmp.le.f32.partialorder %v412, 0.7853982
    %vm414 = vcmp.lt.s32.totalorder %v99, 0
    %v415 = vand.u32 %v99, 2139095040
    %v416 = vshrl.u32 %v415, 23
    %v417 = vsub.s32 %v416, 127
    %v418 = vand.u32 2147483647, %v99
    %v419 = vand.u32 %v418, 8388607
    %v420 = vor.u32 %v419, 8388608
    %v421 = vsub.s32 0, %v420
    %v422 = vadd.s32 %v417, 1
    %vm423 = vcmp.gt.s32.totalorder %v422, 0
    %v424 = vsel %vm423, %v422, 0
    %v425 = vshrl.u32 %v424, 5
    %v426 = vand.u32 %v424, 31
    %v427 = vsub.s32 32, %v426
    %v428 = vshrl.u32 683565275, %v427
    %v429 = vshll.u32 683565275, %v426
    %v430 = vshrl.u32 2475754826, %v427
    %v431 = vor.u32 %v429, %v430
    %v432 = vshll.u32 2475754826, %v426
    %v433 = vshrl.u32 2131351028, %v427
    %v434 = vor.u32 %v432, %v433
    %v435 = vshll.u32 2131351028, %v426
    %v436 = vshrl.u32 2102212464, %v427
    %v437 = vor.u32 %v435, %v436
    %v438 = vshll.u32 2102212464, %v426
    %v439 = vshrl.u32 920167782, %v427
    %v440 = vor.u32 %v438, %v439
    %v441 = vshll.u32 920167782, %v426
    %v442 = vshrl.u32 1326507024, %v427
    %v443 = vor.u32 %v441, %v442
    %vm444 = vcmp.lt.s32.totalorder %v425, 1
    %vm445 = vcmp.lt.s32.totalorder %v425, 2
    %vm446 = vcmp.lt.s32.totalorder %v425, 3
    %vm447 = vcmp.lt.s32.totalorder %v425, 4
    %v448 = vsel %vm444, %v428, %v431
    %v449 = vsel %vm447, %v437, 2102212464
    %v450 = vsel %vm446, %v434, %v449
    %v451 = vsel %vm445, %v448, %v450
    %v452 = vsel %vm444, %v431, %v434
    %v453 = vsel %vm447, %v440, 920167782
    %v454 = vsel %vm446, %v437, %v453
    %v455 = vsel %vm445, %v452, %v454
    %v456 = vsel %vm444, %v434, %v437
    %v457 = vsel %vm447, %v443, 1326507024
    %v458 = vsel %vm446, %v440, %v457
    %v459 = vsel %vm445, %v456, %v458
    %v460 = vshll.u32 %v420, 8
    %v461 = vmul.u32.u64.compose %v460, %v459
    %v462 = vextract.low.u32 %v461
    %v463 = vextract.high.u32 %v461
    %v464 = vmul.u32.u64.compose %v460, %v455
    %v465 = vextract.low.u32 %v464
    %v466 = vextract.high.u32 %v464
    %v467 = vmul.u32 %v460, %v451
    %v468 = vadd.s32 %v463, %v465
    %vm469 = vc.u32 %v463, %v465
    %v470 = vadd.s32 %v466, 1
    %v471 = vsel %vm469, %v470, %v466
    %v472 = vadd.s32 %v467, %v471
    %v473 = vadd.s32 %v472, 536870912
    %v474 = vshrl.u32 %v473, 30
    %v475 = vshll.u32 %v474, 30
    %v476 = vsub.s32 %v472, %v475
    %vm477 = vcmp.lt.s32.totalorder %v476, 0
    %v478 = vsub.s32 0, %v476
    %v479 = vsel %vm477, %v478, %v476
    %v480 = vclz %v479
    %v481 = vsub.s32 %v480, 2
    %vm482 = vcmp.gt.s32.totalorder 0, %v481
    %v483 = vsel %vm482, 0, %v481
    %v484 = vsub.s32 32, %v483
    %v485 = vshll.u32 %v476, %v483
    %v486 = vshrl.u32 %v468, %v484
    %v487 = vor.u32 %v485, %v486
    %v488 = vsub.s32 4294967266, %v483
    %v489 = vadd.s32 %v488, 127
    %v490 = vshll.u32 %v489, 23
    %v491 = vor.u32 4788187, %v490
    %v492 = vand.u32 2147483647, %v491
    %v494 = vcvt.s32.f32 %v487
    %v495 = vmul.f32 %v494, %v492
    %v496 = vxor.u32 %v495, 2147483648
    %v497 = vsel %vm414, %v496, %v495
    %v498 = vsub.s32 4, %v474
    %v499 = vsel %vm414, %v498, %v474
    %v500 = vsel %vm413, %v99, %v497
    %v501 = vsel %vm413, 0, %v499
    %v502 = vcosq.f32.pop %v500
    %v503 = vsinq.f32.pop %v500
    %vm504 = vweird.f32 %v99
    %v505 = vadd.s32 %v501, 3
    %v506 = vand.u32 %v505, 3
    %vm507 = vcmp.lt.s32.totalorder %v506, 2
    %vm508 = vcmp.eq.s32.totalorder %v506, 0
    %v509 = vxor.u32 %v503, 2147483648
    %v510 = vsel %vm508, %v502, %v509
    %vm511 = vcmp.eq.s32.totalorder %v506, 2
    %v512 = vxor.u32 %v502, 2147483648
    %v513 = vsel %vm511, %v512, %v503
    %v514 = vsel %vm507, %v510, %v513
    %v515 = vsel %vm504, nan, %v514
    %v516 = vpack.c.bf16 %v411, %v203
    %v517 = vpack.c.bf16 %v515, %v307
    %v518 = vld [vmem:[#allocation2] sm:$0xf]
    %v519 = vld [vmem:[#allocation2 + $0x4] sm:$0xf]
    %v520 = vld [vmem:[#allocation2 + $0x8] sm:$0xf]
    %v521 = vld [vmem:[#allocation2 + $0xc] sm:$0xf]
    %v522 = vld [vmem:[#allocation2 + $0x10] sm:$0xf]
    %v523 = vld [vmem:[#allocation2 + $0x14] sm:$0xf]
    %v524 = vld [vmem:[#allocation2 + $0x18] sm:$0xf]
    %v525 = vld [vmem:[#allocation2 + $0x1c] sm:$0xf]
    %v526 = vld [vmem:[#allocation2 + $0x20] sm:$0xf]
    %v527 = vld [vmem:[#allocation2 + $0x24] sm:$0xf]
    %v528 = vld [vmem:[#allocation2 + $0x28] sm:$0xf]
    %v529 = vld [vmem:[#allocation2 + $0x2c] sm:$0xf]
    %v530 = vld [vmem:[#allocation2 + $0x30] sm:$0xf]
    %v531 = vld [vmem:[#allocation2 + $0x34] sm:$0xf]
    %v532 = vld [vmem:[#allocation2 + $0x38] sm:$0xf]
    %v533 = vld [vmem:[#allocation2 + $0x3c] sm:$0xf]
    %v534 = vld [vmem:[#allocation2 + $0x40] sm:$0xf]
    %v535 = vld [vmem:[#allocation2 + $0x44] sm:$0xf]
    %v536 = vld [vmem:[#allocation2 + $0x48] sm:$0xf]
    %v537 = vld [vmem:[#allocation2 + $0x4c] sm:$0xf]
    %v538 = vld [vmem:[#allocation2 + $0x50] sm:$0xf]
    %v539 = vld [vmem:[#allocation2 + $0x54] sm:$0xf]
    %v540 = vld [vmem:[#allocation2 + $0x58] sm:$0xf]
    %v541 = vld [vmem:[#allocation2 + $0x5c] sm:$0xf]
    %v542 = vld [vmem:[#allocation2 + $0x60] sm:$0xf]
    %v543 = vld [vmem:[#allocation2 + $0x64] sm:$0xf]
    %v544 = vld [vmem:[#allocation2 + $0x68] sm:$0xf]
    %v545 = vld [vmem:[#allocation2 + $0x6c] sm:$0xf]
    %v546 = vld [vmem:[#allocation2 + $0x70] sm:$0xf]
    %v547 = vld [vmem:[#allocation2 + $0x74] sm:$0xf]
    %v548 = vld [vmem:[#allocation2 + $0x78] sm:$0xf]
    %v549 = vld [vmem:[#allocation2 + $0x7c] sm:$0xf]
    %v550 = vld [vmem:[%s4] sm:$0x1]
    %v552 = vlaneseq
    %v553 = vshrl.u32 %v552, 7
    %v554 = vsub.s32 0, %v553
    %v555 = vrot.slane %v550, %v554
    %v589 = vunpack.c.l.b16 %v518
    %v590 = vunpack.c.l.b16 %v519
    %v591 = vunpack.c.l.b16 %v520
    %v592 = vunpack.c.l.b16 %v521
    %v593 = vunpack.c.l.b16 %v522
    %v594 = vunpack.c.l.b16 %v523
    %v595 = vunpack.c.l.b16 %v524
    %v596 = vunpack.c.l.b16 %v525
    %v597 = vunpack.c.l.b16 %v526
    %v598 = vunpack.c.l.b16 %v527
    %v599 = vunpack.c.l.b16 %v528
    %v600 = vunpack.c.l.b16 %v529
    %v601 = vunpack.c.l.b16 %v530
    %v602 = vunpack.c.l.b16 %v531
    %v603 = vunpack.c.l.b16 %v532
    %v604 = vunpack.c.l.b16 %v533
    %v605 = vunpack.c.l.b16 %v534
    %v606 = vunpack.c.l.b16 %v535
    %v607 = vunpack.c.l.b16 %v536
    %v608 = vunpack.c.l.b16 %v537
    %v609 = vunpack.c.l.b16 %v538
    %v610 = vunpack.c.l.b16 %v539
    %v611 = vunpack.c.l.b16 %v540
    %v612 = vunpack.c.l.b16 %v541
    %v613 = vunpack.c.l.b16 %v542
    %v614 = vunpack.c.l.b16 %v543
    %v615 = vunpack.c.l.b16 %v544
    %v616 = vunpack.c.l.b16 %v545
    %v617 = vunpack.c.l.b16 %v546
    %v618 = vunpack.c.l.b16 %v547
    %v619 = vunpack.c.l.b16 %v548
    %v620 = vunpack.c.l.b16 %v549
    %v621 = vpack.c.b16 %v590, %v589
    %v622 = vpack.c.b16 %v592, %v591
    %v623 = vpack.c.b16 %v594, %v593
    %v624 = vpack.c.b16 %v596, %v595
    %v625 = vpack.c.b16 %v598, %v597
    %v626 = vpack.c.b16 %v600, %v599
    %v627 = vpack.c.b16 %v602, %v601
    %v628 = vpack.c.b16 %v604, %v603
    %v629 = vpack.c.b16 %v606, %v605
    %v630 = vpack.c.b16 %v608, %v607
    %v631 = vpack.c.b16 %v610, %v609
    %v632 = vpack.c.b16 %v612, %v611
    %v633 = vpack.c.b16 %v614, %v613
    %v634 = vpack.c.b16 %v616, %v615
    %v635 = vpack.c.b16 %v618, %v617
    %v636 = vpack.c.b16 %v620, %v619
    %653 = vmatprep.subr.bf16.mxu0 0
    %654 = vmatpush1.bf16.msra.mxu0 %v628
    %655 = vmatprep.subr.bf16.mxu0 0
    %656 = vmatpush1.bf16.msra.mxu0 %v627
    %657 = vmatprep.subr.bf16.mxu0 0
    %658 = vmatpush1.bf16.msra.mxu0 %v626
    %659 = vmatprep.subr.bf16.mxu0 0
    %660 = vmatpush1.bf16.msra.mxu0 %v625
    %661 = vmatprep.subr.bf16.mxu0 0
    %662 = vmatpush1.bf16.msra.mxu0 %v624
    %663 = vmatprep.subr.bf16.mxu0 0
    %664 = vmatpush1.bf16.msra.mxu0 %v623
    %665 = vmatprep.subr.bf16.mxu0 0
    %666 = vmatpush1.bf16.msra.mxu0 %v622
    %667 = vmatprep.subr.bf16.mxu0 0
    %668 = vmatpush1.bf16.msra.mxu0 %v621
    %669 = vmatprep.subr.bf16.mxu0 0
    %670 = vmatpush2.bf16.msra.mxu0 %v636
    %671 = vmatprep.subr.bf16.mxu0 0
    %672 = vmatpush2.bf16.msra.mxu0 %v635
    %673 = vmatprep.subr.bf16.mxu0 0
    %674 = vmatpush2.bf16.msra.mxu0 %v634
    %675 = vmatprep.subr.bf16.mxu0 0
    %676 = vmatpush2.bf16.msra.mxu0 %v633
    %677 = vmatprep.subr.bf16.mxu0 0
    %678 = vmatpush2.bf16.msra.mxu0 %v632
    %679 = vmatprep.subr.bf16.mxu0 0
    %680 = vmatpush2.bf16.msra.mxu0 %v631
    %681 = vmatprep.subr.bf16.mxu0 0
    %682 = vmatpush2.bf16.msra.mxu0 %v630
    %683 = vmatprep.subr.bf16.mxu0 0
    %684 = vmatpush2.bf16.msra.mxu0 %v629
    %685 = vmatprep.mubr.bf16.mxu0 %v517
    %686 = vmatmul.mubr.bf16.gmra.mxu0 %v516
    %v687 = vpop.f32.mrf.mxu0
    %v688 = vadd.f32 %v555, %v687
    %v689 = vpop.f32.mrf.mxu0
    %v690 = vpop.f32.mrf.mxu0
    %v691 = vadd.f32 %v555, %v690
    %v692 = vpop.f32.mrf.mxu0
    %693 = vdwg.mxu0
    %v694 = vxor.u32 %v688, 2147483648
    %v695 = vxor.u32 %v691, 2147483648
    %v696 = vmul.f32 %v694, 1.442695
    %v697 = vpow.pop %v696
    %v698 = vmul.f32 %v695, 1.442695
    %v699 = vpow.pop %v698
    %v700 = vadd.f32 %v697, 1.0
    %v701 = vadd.f32 %v699, 1.0
    %v702 = vrcp.pop %v700
    %v703 = vmul.f32 1.0, %v702
    %v704 = vrcp.pop %v701
    %v705 = vmul.f32 1.0, %v704
    %v706 = vmul.f32 %v688, %v703
    %v707 = vmul.f32 %v691, %v705
    %v708 = vpack.c.bf16 %v707, %v706
    %v709 = vld [vmem:[#allocation5] sm:$0xf]
    %v710 = vld [vmem:[#allocation5 + $0x4] sm:$0xf]
    %v711 = vld [vmem:[#allocation5 + $0x8] sm:$0xf]
    %v712 = vld [vmem:[#allocation5 + $0xc] sm:$0xf]
    %v713 = vld [vmem:[#allocation5 + $0x10] sm:$0xf]
    %v714 = vld [vmem:[#allocation5 + $0x14] sm:$0xf]
    %v715 = vld [vmem:[#allocation5 + $0x18] sm:$0xf]
    %v716 = vld [vmem:[#allocation5 + $0x1c] sm:$0xf]
    %v717 = vld [vmem:[#allocation5 + $0x20] sm:$0xf]
    %v718 = vld [vmem:[#allocation5 + $0x24] sm:$0xf]
    %v719 = vld [vmem:[#allocation5 + $0x28] sm:$0xf]
    %v720 = vld [vmem:[#allocation5 + $0x2c] sm:$0xf]
    %v721 = vld [vmem:[#allocation5 + $0x30] sm:$0xf]
    %v722 = vld [vmem:[#allocation5 + $0x34] sm:$0xf]
    %v723 = vld [vmem:[#allocation5 + $0x38] sm:$0xf]
    %v724 = vld [vmem:[#allocation5 + $0x3c] sm:$0xf]
    %v725 = vld [vmem:[%s6] sm:$0x1]
    %v727 = vlaneseq
    %v728 = vshrl.u32 %v727, 7
    %v729 = vsub.s32 0, %v728
    %v730 = vrot.slane %v725, %v729
    %v748 = vunpack.c.l.b16 %v709
    %v749 = vunpack.c.l.b16 %v710
    %v750 = vunpack.c.l.b16 %v711
    %v751 = vunpack.c.l.b16 %v712
    %v752 = vunpack.c.l.b16 %v713
    %v753 = vunpack.c.l.b16 %v714
    %v754 = vunpack.c.l.b16 %v715
    %v755 = vunpack.c.l.b16 %v716
    %v756 = vunpack.c.l.b16 %v717
    %v757 = vunpack.c.l.b16 %v718
    %v758 = vunpack.c.l.b16 %v719
    %v759 = vunpack.c.l.b16 %v720
    %v760 = vunpack.c.l.b16 %v721
    %v761 = vunpack.c.l.b16 %v722
    %v762 = vunpack.c.l.b16 %v723
    %v763 = vunpack.c.l.b16 %v724
    %v764 = vpack.c.b16 %v749, %v748
    %v765 = vpack.c.b16 %v751, %v750
    %v766 = vpack.c.b16 %v753, %v752
    %v767 = vpack.c.b16 %v755, %v754
    %v768 = vpack.c.b16 %v757, %v756
    %v769 = vpack.c.b16 %v759, %v758
    %v770 = vpack.c.b16 %v761, %v760
    %v771 = vpack.c.b16 %v763, %v762
    %780 = vmatprep.subr.bf16.mxu0 0
    %781 = vmatpush1.bf16.msra.mxu0 %v771
    %782 = vmatprep.subr.bf16.mxu0 0
    %783 = vmatpush1.bf16.msra.mxu0 %v770
    %784 = vmatprep.subr.bf16.mxu0 0
    %785 = vmatpush1.bf16.msra.mxu0 %v769
    %786 = vmatprep.subr.bf16.mxu0 0
    %787 = vmatpush1.bf16.msra.mxu0 %v768
    %788 = vmatprep.subr.bf16.mxu0 0
    %789 = vmatpush1.bf16.msra.mxu0 %v767
    %790 = vmatprep.subr.bf16.mxu0 0
    %791 = vmatpush1.bf16.msra.mxu0 %v766
    %792 = vmatprep.subr.bf16.mxu0 0
    %793 = vmatpush1.bf16.msra.mxu0 %v765
    %794 = vmatprep.subr.bf16.mxu0 0
    %795 = vmatpush1.bf16.msra.mxu0 %v764
    %796 = vmatprep.subr.bf16.mxu0 0
    %797 = vmatpush2.bf16.msra.mxu0 0
    %798 = vmatprep.subr.bf16.mxu0 0
    %799 = vmatpush2.bf16.msra.mxu0 0
    %800 = vmatprep.subr.bf16.mxu0 0
    %801 = vmatpush2.bf16.msra.mxu0 0
    %802 = vmatprep.subr.bf16.mxu0 0
    %803 = vmatpush2.bf16.msra.mxu0 0
    %804 = vmatprep.subr.bf16.mxu0 0
    %805 = vmatpush2.bf16.msra.mxu0 0
    %806 = vmatprep.subr.bf16.mxu0 0
    %807 = vmatpush2.bf16.msra.mxu0 0
    %808 = vmatprep.subr.bf16.mxu0 0
    %809 = vmatpush2.bf16.msra.mxu0 0
    %810 = vmatprep.subr.bf16.mxu0 0
    %811 = vmatpush2.bf16.msra.mxu0 0
    %812 = vmatprep.mubr.bf16.mxu0 0
    %813 = vmatmul.mubr.bf16.gmra.mxu0 %v708
    %v814 = vpop.f32.mrf.mxu0
    %v815 = vadd.f32 %v730, %v814
    %v816 = vpop.f32.mrf.mxu0
    %v817 = vpop.f32.mrf.mxu0
    %v818 = vadd.f32 %v730, %v817
    %v819 = vpop.f32.mrf.mxu0
    %820 = vdwg.mxu0
    %821 = vst [vmem:[#allocation7] sm:$0xff] %v815
    %822 = vst [vmem:[#allocation7 + $0x8] sm:$0xff] %v818
    // Predicated region
    $region38: #{tpu_custom_call.1} parent=1 // pred_check
      _
    $region39: #{tpu_custom_call.1} parent=1 // pred_check_branch
      %824 = sbr.rel (0) target = $region41
    $region40: #{tpu_custom_call.1} parent=1 // pred_region
      %s826 = ssub.s32 256, 256
      %827 = vsyncadd [#allocation4], %s826
      %s828 = sshll.u32 [#allocation7], 4
      %s829 = int_to_ptr.vmem [resolvable:$true] %s828
      %834 = dma.vmem_to_hbm [thread:$0]  %s829, 256, %s7, [#allocation4], 128, 128, 8
    $region41: #{tpu_custom_call.1} parent=1 // pred_fallthru
      _
    // Predicated region
    $region42: #{tpu_custom_call.1} parent=1 // pred_check
      _
    $region43: #{tpu_custom_call.1} parent=1 // pred_check_branch
      %836 = sbr.rel (0) target = $region45
    $region44: #{tpu_custom_call.1} parent=1 // pred_region
      %837 = dma.done [#allocation4], 256
    $region45: #{tpu_custom_call.1} parent=1 // pred_fallthru
      _
    %838 = vsyncpa [#allocation3], 1
    %839 = vsyncpa [#allocation6], 1
    %840 = vsyncpa [#allocation4], 1

</llo_original>
